<compile_context>
chip_gen: v7x
topology: tpu7x:2x2x1
jax: 0.10.0
libtpu: 0.0.40
codegen_flags: <defaults>
</compile_context>

<pallas_src>
import functools

import jax
import jax.numpy as jnp
from jax.experimental import pallas as pl
from jax.experimental.pallas import tpu as pltpu

INPUT_SIZE = 32
LATENT = 58
N_CLASSES = 2
N_OUT = 1                 # n_classes <= 2 -> 1
N_HIDDEN = 5
N_LAYERS = N_HIDDEN + 1   # 5 hidden + 1 output linear
PAD = 128                 # lane-aligned feature width
BATCH = 8


def _mish(z):
    # mish(z) = z * tanh(softplus(z)) = z * ((1+e^z)^2 - 1) / ((1+e^z)^2 + 1)
    # Clamp before exp: for z > 20, tanh(softplus(z)) == 1 in f32 anyway.
    e = jnp.exp(jnp.minimum(z, 20.0))
    n = (1.0 + e) * (1.0 + e)
    return z * (n - 1.0) * pl.reciprocal(n + 1.0, approx=True)


def mlp_kernel(x_ref, w_ref, b_ref, o_ref):
    """Fused MLP forward for one batch tile.

    x_ref : [TB, INPUT_SIZE]  f32 input tile
    w_ref : [N_LAYERS, PAD, PAD] bf16 packed, zero-padded weights (resident)
    b_ref : [N_LAYERS, 1, PAD]   f32  packed, zero-padded biases  (resident)
    o_ref : [TB, PAD]            f32 (real output in column 0, rest exactly 0)
    """
    # Layer 0: K = INPUT_SIZE (32); sublane slice start/len are multiples of 16.
    z = jnp.dot(x_ref[...].astype(jnp.bfloat16), w_ref[0, :INPUT_SIZE, :],
                preferred_element_type=jnp.float32) + b_ref[0]
    h = _mish(z)
    for k in range(1, N_HIDDEN):
        z = jnp.dot(h.astype(jnp.bfloat16), w_ref[k],
                    preferred_element_type=jnp.float32) + b_ref[k]
        h = _mish(z)
    out = jnp.dot(h.astype(jnp.bfloat16), w_ref[N_HIDDEN],
                  preferred_element_type=jnp.float32) + b_ref[N_HIDDEN]
    o_ref[...] = out.astype(o_ref.dtype)


@functools.partial(jax.jit, static_argnames=("block_b",))
def mlp_forward(x, W, B, *, block_b=256):
    bsz, in_dim = x.shape
    assert in_dim == INPUT_SIZE
    # Batch tile: multiple of 8 sublanes, capped at block_b.
    tb = min(block_b, ((bsz + 7) // 8) * 8)
    padded_b = ((bsz + tb - 1) // tb) * tb
    if padded_b != bsz:
        x = jnp.pad(x, ((0, padded_b - bsz), (0, 0)))
    grid = (padded_b // tb,)

    out_pad = pl.pallas_call(
        mlp_kernel,
        out_shape=jax.ShapeDtypeStruct((padded_b, PAD), jnp.float32),
        grid=grid,
        in_specs=[
            pl.BlockSpec((tb, INPUT_SIZE), lambda i: (i, 0)),
            pl.BlockSpec((N_LAYERS, PAD, PAD), lambda i: (0, 0, 0)),  # resident
            pl.BlockSpec((N_LAYERS, 1, PAD), lambda i: (0, 0, 0)),    # resident
        ],
        out_specs=pl.BlockSpec((tb, PAD), lambda i: (i, 0)),
        compiler_params=pltpu.CompilerParams(
            dimension_semantics=("parallel",)),
    )(x, W, B)
    return out_pad[:bsz, :N_OUT]


def init_params(key):
    """Deterministic init mirroring init_weights():
    kaiming-uniform-style for weights (in_features > 1), bias = 0.001.
    Returns unpadded (reference) params in f32."""
    k0, k1, k2 = jax.random.split(key, 3)

    def kaiming_uniform(k, shape_in_out):
        fan_in = shape_in_out[0]
        a = 0.01  # leaky_relu negative slope used by kaiming_uniform
        bound = jnp.sqrt(6.0 / ((1.0 + a * a) * fan_in))
        return jax.random.uniform(k, shape_in_out, jnp.float32, -bound, bound)

    w0 = kaiming_uniform(k0, (INPUT_SIZE, LATENT))
    b0 = jnp.full((LATENT,), 0.001, jnp.float32)

    keys_h = jax.random.split(k1, N_HIDDEN - 1)
    wh = jnp.stack([kaiming_uniform(kh, (LATENT, LATENT)) for kh in keys_h])
    bh = jnp.full((N_HIDDEN - 1, LATENT), 0.001, jnp.float32)

    wo = kaiming_uniform(k2, (LATENT, N_OUT))
    bo = jnp.full((N_OUT,), 0.001, jnp.float32)
    return w0, b0, wh, bh, wo, bo


def pack_params(w0, b0, wh, bh, wo, bo):
    """Pack weights into one zero-padded bf16 [6,128,128] slab and biases into an
    f32 [6,1,128] slab. Zero padding keeps the math unchanged (padded lanes stay
    exactly zero through every layer: mish(0) == 0)."""
    W = jnp.zeros((N_LAYERS, PAD, PAD), jnp.float32)
    B = jnp.zeros((N_LAYERS, 1, PAD), jnp.float32)
    W = W.at[0, :INPUT_SIZE, :LATENT].set(w0)
    B = B.at[0, 0, :LATENT].set(b0)
    for k in range(N_HIDDEN - 1):
        W = W.at[1 + k, :LATENT, :LATENT].set(wh[k])
        B = B.at[1 + k, 0, :LATENT].set(bh[k])
    W = W.at[N_HIDDEN, :LATENT, :N_OUT].set(wo)
    B = B.at[N_HIDDEN, 0, :N_OUT].set(bo)
    return W.astype(jnp.bfloat16), B


def reference_forward(x, w0, b0, wh, bh, wo, bo):
    """Reference matching the kernel's deliberate numerics: bf16 matmul operands,
    f32 accumulation, f32 mish (exact tanh/softplus form)."""
    def mm(a, w):
        return jnp.dot(a.astype(jnp.bfloat16), w.astype(jnp.bfloat16),
                       preferred_element_type=jnp.float32)

    def mish(z):
        return z * jnp.tanh(jax.nn.softplus(z))

    h = mish(mm(x, w0) + b0[None, :])
    for k in range(N_HIDDEN - 1):
        h = mish(mm(h, wh[k]) + bh[k][None, :])
    return mm(h, wo) + bo[None, :]


if __name__ == "__main__":
    key = jax.random.PRNGKey(0)
    kx, kp = jax.random.split(key)
    x = jax.random.normal(kx, (BATCH, INPUT_SIZE), jnp.float32)

    raw_params = init_params(kp)
    W, B = pack_params(*raw_params)

    out = mlp_forward(x, W, B)
    out = jax.block_until_ready(out)

    ref = reference_forward(x, *raw_params)
    assert out.shape == (BATCH, N_OUT), out.shape
    assert jnp.allclose(out, ref, atol=1e-2, rtol=1e-2), (out, ref)
    print("KERNEL_OK")
</pallas_src>

<mosaic_0001>
module attributes {stable_mosaic.version = 11 : i64} {
  func.func @mlp_kernel(%arg0: i32, %arg1: memref<8x32xf32, #tpu.memory_space<vmem>>, %arg2: memref<6x128x128xbf16, #tpu.memory_space<vmem>>, %arg3: memref<6x1x128xf32, #tpu.memory_space<vmem>>, %arg4: memref<8x128xf32, #tpu.memory_space<vmem>>) attributes {dimension_semantics = [#tpu.dimension_semantics<parallel>], iteration_bounds = array<i64: 1>, scalar_prefetch = 0 : i64, scratch_operands = 0 : i64, tpu.core_type = #tpu.core_type<tc>, window_params = [{transform_indices = @transform_0, window_bounds = array<i64: 8, 32>}, {pipeline_mode = #tpu.pipeline_mode<synchronous>, transform_indices = @transform_1, window_bounds = array<i64: 6, 128, 128>}, {pipeline_mode = #tpu.pipeline_mode<synchronous>, transform_indices = @transform_2, window_bounds = array<i64: 6, 1, 128>}, {transform_indices = @transform_3, window_bounds = array<i64: 8, 128>}]} {
    %c0 = arith.constant 0 : index
    %c0_0 = arith.constant 0 : index
    %0 = vector.load %arg1[%c0, %c0_0] : memref<8x32xf32, #tpu.memory_space<vmem>>, vector<8x32xf32>
    %1 = arith.truncf %0 : vector<8x32xf32> to vector<8x32xbf16>
    %c0_1 = arith.constant 0 : index
    %c0_2 = arith.constant 0 : index
    %c0_3 = arith.constant 0 : index
    %2 = vector.load %arg2[%c0_1, %c0_2, %c0_3] : memref<6x128x128xbf16, #tpu.memory_space<vmem>>, vector<1x32x128xbf16>
    %3 = vector.shape_cast %2 : vector<1x32x128xbf16> to vector<32x128xbf16>
    %cst = arith.constant dense<0.000000e+00> : vector<8x128xf32>
    %4 = tpu.matmul %1, %3, %cst {dimension_numbers = #tpu.dot_dimension_numbers<[1], [0], [0], [1], [0, 0, 1, 1], [], []>} : vector<8x32xbf16>, vector<32x128xbf16>, vector<8x128xf32> -> vector<8x128xf32>
    %c0_4 = arith.constant 0 : index
    %c0_5 = arith.constant 0 : index
    %c0_6 = arith.constant 0 : index
    %5 = vector.load %arg3[%c0_4, %c0_5, %c0_6] : memref<6x1x128xf32, #tpu.memory_space<vmem>>, vector<1x1x128xf32>
    %6 = vector.shape_cast %5 : vector<1x1x128xf32> to vector<1x128xf32>
    %7 = vector.broadcast %6 : vector<1x128xf32> to vector<8x128xf32>
    %8 = arith.addf %4, %7 : vector<8x128xf32>
    %cst_7 = arith.constant 2.000000e+01 : f32
    %9 = vector.broadcast %cst_7 : f32 to vector<8x128xf32>
    %10 = arith.minimumf %8, %9 : vector<8x128xf32>
    %11 = math.exp %10 : vector<8x128xf32>
    %cst_8 = arith.constant 1.000000e+00 : f32
    %12 = vector.broadcast %cst_8 : f32 to vector<8x128xf32>
    %13 = arith.addf %12, %11 : vector<8x128xf32>
    %cst_9 = arith.constant 1.000000e+00 : f32
    %14 = vector.broadcast %cst_9 : f32 to vector<8x128xf32>
    %15 = arith.addf %14, %11 : vector<8x128xf32>
    %16 = arith.mulf %13, %15 : vector<8x128xf32>
    %cst_10 = arith.constant 1.000000e+00 : f32
    %17 = vector.broadcast %cst_10 : f32 to vector<8x128xf32>
    %18 = arith.subf %16, %17 : vector<8x128xf32>
    %19 = arith.mulf %8, %18 : vector<8x128xf32>
    %cst_11 = arith.constant 1.000000e+00 : f32
    %20 = vector.broadcast %cst_11 : f32 to vector<8x128xf32>
    %21 = arith.addf %16, %20 : vector<8x128xf32>
    %22 = tpu.reciprocal %21 {approx = true} : vector<8x128xf32> -> vector<8x128xf32>
    %23 = arith.mulf %19, %22 : vector<8x128xf32>
    %24 = arith.truncf %23 : vector<8x128xf32> to vector<8x128xbf16>
    %c1 = arith.constant 1 : index
    %c0_12 = arith.constant 0 : index
    %c0_13 = arith.constant 0 : index
    %25 = vector.load %arg2[%c1, %c0_12, %c0_13] : memref<6x128x128xbf16, #tpu.memory_space<vmem>>, vector<1x128x128xbf16>
    %26 = vector.shape_cast %25 : vector<1x128x128xbf16> to vector<128x128xbf16>
    %cst_14 = arith.constant dense<0.000000e+00> : vector<8x128xf32>
    %27 = tpu.matmul %24, %26, %cst_14 {dimension_numbers = #tpu.dot_dimension_numbers<[1], [0], [0], [1], [0, 0, 1, 1], [], []>} : vector<8x128xbf16>, vector<128x128xbf16>, vector<8x128xf32> -> vector<8x128xf32>
    %c1_15 = arith.constant 1 : index
    %c0_16 = arith.constant 0 : index
    %c0_17 = arith.constant 0 : index
    %28 = vector.load %arg3[%c1_15, %c0_16, %c0_17] : memref<6x1x128xf32, #tpu.memory_space<vmem>>, vector<1x1x128xf32>
    %29 = vector.shape_cast %28 : vector<1x1x128xf32> to vector<1x128xf32>
    %30 = vector.broadcast %29 : vector<1x128xf32> to vector<8x128xf32>
    %31 = arith.addf %27, %30 : vector<8x128xf32>
    %cst_18 = arith.constant 2.000000e+01 : f32
    %32 = vector.broadcast %cst_18 : f32 to vector<8x128xf32>
    %33 = arith.minimumf %31, %32 : vector<8x128xf32>
    %34 = math.exp %33 : vector<8x128xf32>
    %cst_19 = arith.constant 1.000000e+00 : f32
    %35 = vector.broadcast %cst_19 : f32 to vector<8x128xf32>
    %36 = arith.addf %35, %34 : vector<8x128xf32>
    %cst_20 = arith.constant 1.000000e+00 : f32
    %37 = vector.broadcast %cst_20 : f32 to vector<8x128xf32>
    %38 = arith.addf %37, %34 : vector<8x128xf32>
    %39 = arith.mulf %36, %38 : vector<8x128xf32>
    %cst_21 = arith.constant 1.000000e+00 : f32
    %40 = vector.broadcast %cst_21 : f32 to vector<8x128xf32>
    %41 = arith.subf %39, %40 : vector<8x128xf32>
    %42 = arith.mulf %31, %41 : vector<8x128xf32>
    %cst_22 = arith.constant 1.000000e+00 : f32
    %43 = vector.broadcast %cst_22 : f32 to vector<8x128xf32>
    %44 = arith.addf %39, %43 : vector<8x128xf32>
    %45 = tpu.reciprocal %44 {approx = true} : vector<8x128xf32> -> vector<8x128xf32>
    %46 = arith.mulf %42, %45 : vector<8x128xf32>
    %47 = arith.truncf %46 : vector<8x128xf32> to vector<8x128xbf16>
    %c2 = arith.constant 2 : index
    %c0_23 = arith.constant 0 : index
    %c0_24 = arith.constant 0 : index
    %48 = vector.load %arg2[%c2, %c0_23, %c0_24] : memref<6x128x128xbf16, #tpu.memory_space<vmem>>, vector<1x128x128xbf16>
    %49 = vector.shape_cast %48 : vector<1x128x128xbf16> to vector<128x128xbf16>
    %cst_25 = arith.constant dense<0.000000e+00> : vector<8x128xf32>
    %50 = tpu.matmul %47, %49, %cst_25 {dimension_numbers = #tpu.dot_dimension_numbers<[1], [0], [0], [1], [0, 0, 1, 1], [], []>} : vector<8x128xbf16>, vector<128x128xbf16>, vector<8x128xf32> -> vector<8x128xf32>
    %c2_26 = arith.constant 2 : index
    %c0_27 = arith.constant 0 : index
    %c0_28 = arith.constant 0 : index
    %51 = vector.load %arg3[%c2_26, %c0_27, %c0_28] : memref<6x1x128xf32, #tpu.memory_space<vmem>>, vector<1x1x128xf32>
    %52 = vector.shape_cast %51 : vector<1x1x128xf32> to vector<1x128xf32>
    %53 = vector.broadcast %52 : vector<1x128xf32> to vector<8x128xf32>
    %54 = arith.addf %50, %53 : vector<8x128xf32>
    %cst_29 = arith.constant 2.000000e+01 : f32
    %55 = vector.broadcast %cst_29 : f32 to vector<8x128xf32>
    %56 = arith.minimumf %54, %55 : vector<8x128xf32>
    %57 = math.exp %56 : vector<8x128xf32>
    %cst_30 = arith.constant 1.000000e+00 : f32
    %58 = vector.broadcast %cst_30 : f32 to vector<8x128xf32>
    %59 = arith.addf %58, %57 : vector<8x128xf32>
    %cst_31 = arith.constant 1.000000e+00 : f32
    %60 = vector.broadcast %cst_31 : f32 to vector<8x128xf32>
    %61 = arith.addf %60, %57 : vector<8x128xf32>
    %62 = arith.mulf %59, %61 : vector<8x128xf32>
    %cst_32 = arith.constant 1.000000e+00 : f32
    %63 = vector.broadcast %cst_32 : f32 to vector<8x128xf32>
    %64 = arith.subf %62, %63 : vector<8x128xf32>
    %65 = arith.mulf %54, %64 : vector<8x128xf32>
    %cst_33 = arith.constant 1.000000e+00 : f32
    %66 = vector.broadcast %cst_33 : f32 to vector<8x128xf32>
    %67 = arith.addf %62, %66 : vector<8x128xf32>
    %68 = tpu.reciprocal %67 {approx = true} : vector<8x128xf32> -> vector<8x128xf32>
    %69 = arith.mulf %65, %68 : vector<8x128xf32>
    %70 = arith.truncf %69 : vector<8x128xf32> to vector<8x128xbf16>
    %c3 = arith.constant 3 : index
    %c0_34 = arith.constant 0 : index
    %c0_35 = arith.constant 0 : index
    %71 = vector.load %arg2[%c3, %c0_34, %c0_35] : memref<6x128x128xbf16, #tpu.memory_space<vmem>>, vector<1x128x128xbf16>
    %72 = vector.shape_cast %71 : vector<1x128x128xbf16> to vector<128x128xbf16>
    %cst_36 = arith.constant dense<0.000000e+00> : vector<8x128xf32>
    %73 = tpu.matmul %70, %72, %cst_36 {dimension_numbers = #tpu.dot_dimension_numbers<[1], [0], [0], [1], [0, 0, 1, 1], [], []>} : vector<8x128xbf16>, vector<128x128xbf16>, vector<8x128xf32> -> vector<8x128xf32>
    %c3_37 = arith.constant 3 : index
    %c0_38 = arith.constant 0 : index
    %c0_39 = arith.constant 0 : index
    %74 = vector.load %arg3[%c3_37, %c0_38, %c0_39] : memref<6x1x128xf32, #tpu.memory_space<vmem>>, vector<1x1x128xf32>
    %75 = vector.shape_cast %74 : vector<1x1x128xf32> to vector<1x128xf32>
    %76 = vector.broadcast %75 : vector<1x128xf32> to vector<8x128xf32>
    %77 = arith.addf %73, %76 : vector<8x128xf32>
    %cst_40 = arith.constant 2.000000e+01 : f32
    %78 = vector.broadcast %cst_40 : f32 to vector<8x128xf32>
    %79 = arith.minimumf %77, %78 : vector<8x128xf32>
    %80 = math.exp %79 : vector<8x128xf32>
    %cst_41 = arith.constant 1.000000e+00 : f32
    %81 = vector.broadcast %cst_41 : f32 to vector<8x128xf32>
    %82 = arith.addf %81, %80 : vector<8x128xf32>
    %cst_42 = arith.constant 1.000000e+00 : f32
    %83 = vector.broadcast %cst_42 : f32 to vector<8x128xf32>
    %84 = arith.addf %83, %80 : vector<8x128xf32>
    %85 = arith.mulf %82, %84 : vector<8x128xf32>
    %cst_43 = arith.constant 1.000000e+00 : f32
    %86 = vector.broadcast %cst_43 : f32 to vector<8x128xf32>
    %87 = arith.subf %85, %86 : vector<8x128xf32>
    %88 = arith.mulf %77, %87 : vector<8x128xf32>
    %cst_44 = arith.constant 1.000000e+00 : f32
    %89 = vector.broadcast %cst_44 : f32 to vector<8x128xf32>
    %90 = arith.addf %85, %89 : vector<8x128xf32>
    %91 = tpu.reciprocal %90 {approx = true} : vector<8x128xf32> -> vector<8x128xf32>
    %92 = arith.mulf %88, %91 : vector<8x128xf32>
    %93 = arith.truncf %92 : vector<8x128xf32> to vector<8x128xbf16>
    %c4 = arith.constant 4 : index
    %c0_45 = arith.constant 0 : index
    %c0_46 = arith.constant 0 : index
    %94 = vector.load %arg2[%c4, %c0_45, %c0_46] : memref<6x128x128xbf16, #tpu.memory_space<vmem>>, vector<1x128x128xbf16>
    %95 = vector.shape_cast %94 : vector<1x128x128xbf16> to vector<128x128xbf16>
    %cst_47 = arith.constant dense<0.000000e+00> : vector<8x128xf32>
    %96 = tpu.matmul %93, %95, %cst_47 {dimension_numbers = #tpu.dot_dimension_numbers<[1], [0], [0], [1], [0, 0, 1, 1], [], []>} : vector<8x128xbf16>, vector<128x128xbf16>, vector<8x128xf32> -> vector<8x128xf32>
    %c4_48 = arith.constant 4 : index
    %c0_49 = arith.constant 0 : index
    %c0_50 = arith.constant 0 : index
    %97 = vector.load %arg3[%c4_48, %c0_49, %c0_50] : memref<6x1x128xf32, #tpu.memory_space<vmem>>, vector<1x1x128xf32>
    %98 = vector.shape_cast %97 : vector<1x1x128xf32> to vector<1x128xf32>
    %99 = vector.broadcast %98 : vector<1x128xf32> to vector<8x128xf32>
    %100 = arith.addf %96, %99 : vector<8x128xf32>
    %cst_51 = arith.constant 2.000000e+01 : f32
    %101 = vector.broadcast %cst_51 : f32 to vector<8x128xf32>
    %102 = arith.minimumf %100, %101 : vector<8x128xf32>
    %103 = math.exp %102 : vector<8x128xf32>
    %cst_52 = arith.constant 1.000000e+00 : f32
    %104 = vector.broadcast %cst_52 : f32 to vector<8x128xf32>
    %105 = arith.addf %104, %103 : vector<8x128xf32>
    %cst_53 = arith.constant 1.000000e+00 : f32
    %106 = vector.broadcast %cst_53 : f32 to vector<8x128xf32>
    %107 = arith.addf %106, %103 : vector<8x128xf32>
    %108 = arith.mulf %105, %107 : vector<8x128xf32>
    %cst_54 = arith.constant 1.000000e+00 : f32
    %109 = vector.broadcast %cst_54 : f32 to vector<8x128xf32>
    %110 = arith.subf %108, %109 : vector<8x128xf32>
    %111 = arith.mulf %100, %110 : vector<8x128xf32>
    %cst_55 = arith.constant 1.000000e+00 : f32
    %112 = vector.broadcast %cst_55 : f32 to vector<8x128xf32>
    %113 = arith.addf %108, %112 : vector<8x128xf32>
    %114 = tpu.reciprocal %113 {approx = true} : vector<8x128xf32> -> vector<8x128xf32>
    %115 = arith.mulf %111, %114 : vector<8x128xf32>
    %116 = arith.truncf %115 : vector<8x128xf32> to vector<8x128xbf16>
    %c5 = arith.constant 5 : index
    %c0_56 = arith.constant 0 : index
    %c0_57 = arith.constant 0 : index
    %117 = vector.load %arg2[%c5, %c0_56, %c0_57] : memref<6x128x128xbf16, #tpu.memory_space<vmem>>, vector<1x128x128xbf16>
    %118 = vector.shape_cast %117 : vector<1x128x128xbf16> to vector<128x128xbf16>
    %cst_58 = arith.constant dense<0.000000e+00> : vector<8x128xf32>
    %119 = tpu.matmul %116, %118, %cst_58 {dimension_numbers = #tpu.dot_dimension_numbers<[1], [0], [0], [1], [0, 0, 1, 1], [], []>} : vector<8x128xbf16>, vector<128x128xbf16>, vector<8x128xf32> -> vector<8x128xf32>
    %c5_59 = arith.constant 5 : index
    %c0_60 = arith.constant 0 : index
    %c0_61 = arith.constant 0 : index
    %120 = vector.load %arg3[%c5_59, %c0_60, %c0_61] : memref<6x1x128xf32, #tpu.memory_space<vmem>>, vector<1x1x128xf32>
    %121 = vector.shape_cast %120 : vector<1x1x128xf32> to vector<1x128xf32>
    %122 = vector.broadcast %121 : vector<1x128xf32> to vector<8x128xf32>
    %123 = arith.addf %119, %122 : vector<8x128xf32>
    %c0_62 = arith.constant 0 : index
    %c0_63 = arith.constant 0 : index
    %124 = vector.load %arg4[%c0_62, %c0_63] : memref<8x128xf32, #tpu.memory_space<vmem>>, vector<8x128xf32>
    tpu.vector_store %arg4[%c0_62, %c0_63], %123 {strides = array<i32>} : memref<8x128xf32, #tpu.memory_space<vmem>>, vector<8x128xf32>,
    return
  }
  func.func @transform_0(%arg0: i32) -> (i32, i32) {
    %c0_i32 = arith.constant 0 : i32
    %c0_i32_0 = arith.constant 0 : i32
    return %arg0, %c0_i32 : i32, i32
  }
  func.func @transform_1(%arg0: i32) -> (i32, i32, i32) {
    %c0_i32 = arith.constant 0 : i32
    %c0_i32_0 = arith.constant 0 : i32
    %c0_i32_1 = arith.constant 0 : i32
    %c0_i32_2 = arith.constant 0 : i32
    return %c0_i32, %c0_i32_0, %c0_i32_1 : i32, i32, i32
  }
  func.func @transform_2(%arg0: i32) -> (i32, i32, i32) {
    %c0_i32 = arith.constant 0 : i32
    %c0_i32_0 = arith.constant 0 : i32
    %c0_i32_1 = arith.constant 0 : i32
    %c0_i32_2 = arith.constant 0 : i32
    return %c0_i32, %c0_i32_0, %c0_i32_1 : i32, i32, i32
  }
  func.func @transform_3(%arg0: i32) -> (i32, i32) {
    %c0_i32 = arith.constant 0 : i32
    %c0_i32_0 = arith.constant 0 : i32
    return %arg0, %c0_i32 : i32, i32
  }
}

</mosaic_0001>

<llo_original>
// kernel: mlp_forward.1
$region0: #{mlp_forward.1}
  #allocation0 [shape = 'u32[]', space=smem, size = 0x4, offset = 0x4, fixed_abs, tag = 'smem constant byte address 0x4 - core index']
  #allocation1 [shape = 'u32[144,128]{1,0:T(1,128)}', space=vmem, size = 0x12000, scoped, tag = 'internal scratch']
  %s0 = inlined_call_operand.hbm [shape: f32[8,32], index: 0, kind: input, shape index: {}]
  %s1 = inlined_call_operand.hbm [shape: bf16[6,128,128], index: 1, kind: input, shape index: {}]
  %s2 = inlined_call_operand.vmem [shape: f32[6,1,128], index: 2, kind: input, shape index: {}]
  %s3 = inlined_call_operand.vmem [shape: f32[8,128], index: 3, kind: output, shape index: {}]
  %s4 = sld [smem:[#allocation0]]
  $region30: #{mlp_forward.1} parent=0
    _
  %s6 = ssub.s32 1, %s4
  %s7 = scalar_select 0, %s6, %s4
  $region1: #{mlp_forward.1} parent=0
    #allocation2 [shape = 'u8[4096]{0}', space=vmem, size = 0x1000, scoped, tag = 'input window, operand 0, single buffered']
    #allocation3 [shape = 's32[1]{0}', space=sflag, size = 0x4, scoped, tag = 'scoped memory for mlp_forward.1']
    #allocation4 [shape = 'u8[196608]{0}', space=vmem, size = 0x30000, scoped, tag = 'input window, operand 1, single buffered']
    #allocation5 [shape = 's32[1]{0}', space=sflag, size = 0x4, scoped, tag = 'scoped memory for mlp_forward.1']
    %8 = vsyncpa [#allocation3], 0
    %9 = vsyncpa [#allocation5], 0
    // Predicated region
    $region2: #{mlp_forward.1} parent=1 // pred_check
      _
    $region3: #{mlp_forward.1} parent=1 // pred_check_branch
      %11 = sbr.rel (0) target = $region5
    $region4: #{mlp_forward.1} parent=1 // pred_region
      %s13 = ssub.s32 128, 128
      %14 = vsyncadd [#allocation3], %s13
      %s16 = sshll.u32 [#allocation2], 4
      %s17 = int_to_ptr.vmem [resolvable:$true] %s16
      %19 = dma.hbm_to_vmem [thread:$0]  %s0, 128, %s17, [#allocation3]
    $region5: #{mlp_forward.1} parent=1 // pred_fallthru
      _
    // Predicated region
    $region6: #{mlp_forward.1} parent=1 // pred_check
      _
    $region7: #{mlp_forward.1} parent=1 // pred_check_branch
      %21 = sbr.rel (0) target = $region9
    $region8: #{mlp_forward.1} parent=1 // pred_region
      %s23 = ssub.s32 6144, 6144
      %24 = vsyncadd [#allocation5], %s23
      %s25 = sshll.u32 [#allocation4], 4
      %s26 = int_to_ptr.vmem [resolvable:$true] %s25
      %31 = dma.hbm_to_vmem [thread:$0]  %s1, 6144, %s26, [#allocation5], 64, 64, 4
    $region9: #{mlp_forward.1} parent=1 // pred_fallthru
      _
    // Predicated region
    $region10: #{mlp_forward.1} parent=1 // pred_check
      _
    $region11: #{mlp_forward.1} parent=1 // pred_check_branch
      %33 = sbr.rel (0) target = $region13
    $region12: #{mlp_forward.1} parent=1 // pred_region
      _
    $region13: #{mlp_forward.1} parent=1 // pred_fallthru
      _
    // Predicated region
    $region14: #{mlp_forward.1} parent=1 // pred_check
      _
    $region15: #{mlp_forward.1} parent=1 // pred_check_branch
      %35 = sbr.rel (0) target = $region17
    $region16: #{mlp_forward.1} parent=1 // pred_region
      %36 = dma.done [#allocation3], 128
    $region17: #{mlp_forward.1} parent=1 // pred_fallthru
      _
    // Predicated region
    $region18: #{mlp_forward.1} parent=1 // pred_check
      _
    $region19: #{mlp_forward.1} parent=1 // pred_check_branch
      %38 = sbr.rel (0) target = $region21
    $region20: #{mlp_forward.1} parent=1 // pred_region
      %39 = dma.done [#allocation5], 6144
    $region21: #{mlp_forward.1} parent=1 // pred_fallthru
      _
    %v41 = vld [vmem:[#allocation2] sm:$0xff]
    %v42 = vpack.c.bf16 %v41, %v41
    %v43 = vld [vmem:[#allocation4] sm:$0xf]
    %v44 = vld [vmem:[#allocation4 + $0x4] sm:$0xf]
    %v45 = vld [vmem:[#allocation4 + $0x8] sm:$0xf]
    %v46 = vld [vmem:[#allocation4 + $0xc] sm:$0xf]
    %v47 = vld [vmem:[%s2] sm:$0x1]
    %v49 = vlaneseq
    %v50 = vshrl.u32 %v49, 7
    %v51 = vsub.s32 0, %v50
    %v52 = vrot.slane %v47, %v51
    %v58 = vunpack.c.l.b16 %v43
    %v59 = vunpack.c.l.b16 %v44
    %v60 = vunpack.c.l.b16 %v45
    %v61 = vunpack.c.l.b16 %v46
    %v62 = vpack.c.b16 %v59, %v58
    %v63 = vpack.c.b16 %v61, %v60
    %vm66 = vcmask 261120
    %v68 = vsel %vm66, %v42, 0
    %70 = vmatprep.subr.bf16.mxu0 0
    %71 = vmatpush1.bf16.msra.mxu0 %v62
    %72 = vmatprep.subr.bf16.mxu0 0
    %73 = vmatpush1.bf16.msra.mxu0 %v63
    %74 = vmatprep.subr.bf16.mxu0 0
    %75 = vmatpush1.bf16.msra.mxu0 0
    %76 = vmatprep.subr.bf16.mxu0 0
    %77 = vmatpush1.bf16.msra.mxu0 0
    %78 = vmatprep.subr.bf16.mxu0 0
    %79 = vmatpush1.bf16.msra.mxu0 0
    %80 = vmatprep.subr.bf16.mxu0 0
    %81 = vmatpush1.bf16.msra.mxu0 0
    %82 = vmatprep.subr.bf16.mxu0 0
    %83 = vmatpush1.bf16.msra.mxu0 0
    %84 = vmatprep.subr.bf16.mxu0 0
    %85 = vmatpush1.bf16.msra.mxu0 0
    %86 = vmatprep.subr.bf16.mxu0 0
    %87 = vmatpush1.bf16.msra.mxu0 0
    %88 = vmatprep.subr.bf16.mxu0 0
    %89 = vmatpush1.bf16.msra.mxu0 0
    %90 = vmatprep.subr.bf16.mxu0 0
    %91 = vmatpush1.bf16.msra.mxu0 0
    %92 = vmatprep.subr.bf16.mxu0 0
    %93 = vmatpush1.bf16.msra.mxu0 0
    %94 = vmatprep.subr.bf16.mxu0 0
    %95 = vmatpush1.bf16.msra.mxu0 0
    %96 = vmatprep.subr.bf16.mxu0 0
    %97 = vmatpush1.bf16.msra.mxu0 0
    %98 = vmatprep.subr.bf16.mxu0 0
    %99 = vmatpush1.bf16.msra.mxu0 0
    %100 = vmatprep.subr.bf16.mxu0 0
    %101 = vmatpush1.bf16.msra.mxu0 0
    %102 = vmatprep.mubr.bf16.mxu0 0
    %103 = vmatmul.mubr.bf16.gmra.mrb[0].mxu0 %v68
    %v104 = vpop.f32.mrb[0].mxu0
    %v105 = vadd.f32 %v52, %v104
    %v106 = vpop.f32.mrb[0].mxu0
    %v107 = vpop.f32.mrb[0].mxu0
    %v108 = vpop.f32.mrb[0].mxu0
    %109 = vdwg.mxu0
    %v110 = vmin.f32 %v105, 20.0
    %v111 = vmul.f32 %v110, 1.442695
    %v112 = vpow.pop %v111
    %v113 = vadd.f32 %v112, 1.0
    %v114 = vmul.f32 %v113, %v113
    %v115 = vsub.f32 %v114, 1.0
    %v116 = vmul.f32 %v105, %v115
    %v117 = vadd.f32 %v114, 1.0
    %v118 = vrcp.pop %v117
    %v119 = vmul.f32 %v116, %v118
    %v120 = vpack.c.bf16 %v119, %v119
    %s121 = scalar_lea.vmem [#allocation4], 64
    %v122 = vld [vmem:[%s121] sm:$0xf]
    %v123 = vld [vmem:[%s121 + $0x4] sm:$0xf]
    %v124 = vld [vmem:[%s121 + $0x8] sm:$0xf]
    %v125 = vld [vmem:[%s121 + $0xc] sm:$0xf]
    %v126 = vld [vmem:[%s121 + $0x10] sm:$0xf]
    %v127 = vld [vmem:[%s121 + $0x14] sm:$0xf]
    %v128 = vld [vmem:[%s121 + $0x18] sm:$0xf]
    %v129 = vld [vmem:[%s121 + $0x1c] sm:$0xf]
    %v130 = vld [vmem:[%s121 + $0x20] sm:$0xf]
    %v131 = vld [vmem:[%s121 + $0x24] sm:$0xf]
    %v132 = vld [vmem:[%s121 + $0x28] sm:$0xf]
    %v133 = vld [vmem:[%s121 + $0x2c] sm:$0xf]
    %v134 = vld [vmem:[%s121 + $0x30] sm:$0xf]
    %v135 = vld [vmem:[%s121 + $0x34] sm:$0xf]
    %v136 = vld [vmem:[%s121 + $0x38] sm:$0xf]
    %v137 = vld [vmem:[%s121 + $0x3c] sm:$0xf]
    %s138 = scalar_lea.vmem %s2, 1
    %v139 = vld [vmem:[%s138] sm:$0x1]
    %v141 = vlaneseq
    %v142 = vshrl.u32 %v141, 7
    %v143 = vsub.s32 0, %v142
    %v144 = vrot.slane %v139, %v143
    %v162 = vunpack.c.l.b16 %v122
    %v163 = vunpack.c.l.b16 %v123
    %v164 = vunpack.c.l.b16 %v124
    %v165 = vunpack.c.l.b16 %v125
    %v166 = vunpack.c.l.b16 %v126
    %v167 = vunpack.c.l.b16 %v127
    %v168 = vunpack.c.l.b16 %v128
    %v169 = vunpack.c.l.b16 %v129
    %v170 = vunpack.c.l.b16 %v130
    %v171 = vunpack.c.l.b16 %v131
    %v172 = vunpack.c.l.b16 %v132
    %v173 = vunpack.c.l.b16 %v133
    %v174 = vunpack.c.l.b16 %v134
    %v175 = vunpack.c.l.b16 %v135
    %v176 = vunpack.c.l.b16 %v136
    %v177 = vunpack.c.l.b16 %v137
    %v178 = vpack.c.b16 %v163, %v162
    %v179 = vpack.c.b16 %v165, %v164
    %v180 = vpack.c.b16 %v167, %v166
    %v181 = vpack.c.b16 %v169, %v168
    %v182 = vpack.c.b16 %v171, %v170
    %v183 = vpack.c.b16 %v173, %v172
    %v184 = vpack.c.b16 %v175, %v174
    %v185 = vpack.c.b16 %v177, %v176
    %194 = vmatprep.subr.bf16.mxu0 0
    %195 = vmatpush1.bf16.msra.mxu0 %v178
    %196 = vmatprep.subr.bf16.mxu0 0
    %197 = vmatpush1.bf16.msra.mxu0 %v179
    %198 = vmatprep.subr.bf16.mxu0 0
    %199 = vmatpush1.bf16.msra.mxu0 %v180
    %200 = vmatprep.subr.bf16.mxu0 0
    %201 = vmatpush1.bf16.msra.mxu0 %v181
    %202 = vmatprep.subr.bf16.mxu0 0
    %203 = vmatpush1.bf16.msra.mxu0 %v182
    %204 = vmatprep.subr.bf16.mxu0 0
    %205 = vmatpush1.bf16.msra.mxu0 %v183
    %206 = vmatprep.subr.bf16.mxu0 0
    %207 = vmatpush1.bf16.msra.mxu0 %v184
    %208 = vmatprep.subr.bf16.mxu0 0
    %209 = vmatpush1.bf16.msra.mxu0 %v185
    %210 = vmatprep.subr.bf16.mxu0 0
    %211 = vmatpush1.bf16.msra.mxu0 0
    %212 = vmatprep.subr.bf16.mxu0 0
    %213 = vmatpush1.bf16.msra.mxu0 0
    %214 = vmatprep.subr.bf16.mxu0 0
    %215 = vmatpush1.bf16.msra.mxu0 0
    %216 = vmatprep.subr.bf16.mxu0 0
    %217 = vmatpush1.bf16.msra.mxu0 0
    %218 = vmatprep.subr.bf16.mxu0 0
    %219 = vmatpush1.bf16.msra.mxu0 0
    %220 = vmatprep.subr.bf16.mxu0 0
    %221 = vmatpush1.bf16.msra.mxu0 0
    %222 = vmatprep.subr.bf16.mxu0 0
    %223 = vmatpush1.bf16.msra.mxu0 0
    %224 = vmatprep.subr.bf16.mxu0 0
    %225 = vmatpush1.bf16.msra.mxu0 0
    %226 = vmatprep.mubr.bf16.mxu0 0
    %227 = vmatmul.mubr.bf16.gmra.mrb[0].mxu0 %v120
    %v228 = vpop.f32.mrb[0].mxu0
    %v229 = vadd.f32 %v144, %v228
    %v230 = vpop.f32.mrb[0].mxu0
    %v231 = vpop.f32.mrb[0].mxu0
    %v232 = vpop.f32.mrb[0].mxu0
    %233 = vdwg.mxu0
    %v234 = vmin.f32 %v229, 20.0
    %v235 = vmul.f32 %v234, 1.442695
    %v236 = vpow.pop %v235
    %v237 = vadd.f32 %v236, 1.0
    %v238 = vmul.f32 %v237, %v237
    %v239 = vsub.f32 %v238, 1.0
    %v240 = vmul.f32 %v229, %v239
    %v241 = vadd.f32 %v238, 1.0
    %v242 = vrcp.pop %v241
    %v243 = vmul.f32 %v240, %v242
    %v244 = vpack.c.bf16 %v243, %v243
    %s245 = scalar_lea.vmem [#allocation4], 128
    %v246 = vld [vmem:[%s245] sm:$0xf]
    %v247 = vld [vmem:[%s245 + $0x4] sm:$0xf]
    %v248 = vld [vmem:[%s245 + $0x8] sm:$0xf]
    %v249 = vld [vmem:[%s245 + $0xc] sm:$0xf]
    %v250 = vld [vmem:[%s245 + $0x10] sm:$0xf]
    %v251 = vld [vmem:[%s245 + $0x14] sm:$0xf]
    %v252 = vld [vmem:[%s245 + $0x18] sm:$0xf]
    %v253 = vld [vmem:[%s245 + $0x1c] sm:$0xf]
    %v254 = vld [vmem:[%s245 + $0x20] sm:$0xf]
    %v255 = vld [vmem:[%s245 + $0x24] sm:$0xf]
    %v256 = vld [vmem:[%s245 + $0x28] sm:$0xf]
    %v257 = vld [vmem:[%s245 + $0x2c] sm:$0xf]
    %v258 = vld [vmem:[%s245 + $0x30] sm:$0xf]
    %v259 = vld [vmem:[%s245 + $0x34] sm:$0xf]
    %v260 = vld [vmem:[%s245 + $0x38] sm:$0xf]
    %v261 = vld [vmem:[%s245 + $0x3c] sm:$0xf]
    %s262 = scalar_lea.vmem %s2, 2
    %v263 = vld [vmem:[%s262] sm:$0x1]
    %v265 = vlaneseq
    %v266 = vshrl.u32 %v265, 7
    %v267 = vsub.s32 0, %v266
    %v268 = vrot.slane %v263, %v267
    %v286 = vunpack.c.l.b16 %v246
    %v287 = vunpack.c.l.b16 %v247
    %v288 = vunpack.c.l.b16 %v248
    %v289 = vunpack.c.l.b16 %v249
    %v290 = vunpack.c.l.b16 %v250
    %v291 = vunpack.c.l.b16 %v251
    %v292 = vunpack.c.l.b16 %v252
    %v293 = vunpack.c.l.b16 %v253
    %v294 = vunpack.c.l.b16 %v254
    %v295 = vunpack.c.l.b16 %v255
    %v296 = vunpack.c.l.b16 %v256
    %v297 = vunpack.c.l.b16 %v257
    %v298 = vunpack.c.l.b16 %v258
    %v299 = vunpack.c.l.b16 %v259
    %v300 = vunpack.c.l.b16 %v260
    %v301 = vunpack.c.l.b16 %v261
    %v302 = vpack.c.b16 %v287, %v286
    %v303 = vpack.c.b16 %v289, %v288
    %v304 = vpack.c.b16 %v291, %v290
    %v305 = vpack.c.b16 %v293, %v292
    %v306 = vpack.c.b16 %v295, %v294
    %v307 = vpack.c.b16 %v297, %v296
    %v308 = vpack.c.b16 %v299, %v298
    %v309 = vpack.c.b16 %v301, %v300
    %318 = vmatprep.subr.bf16.mxu0 0
    %319 = vmatpush1.bf16.msra.mxu0 %v302
    %320 = vmatprep.subr.bf16.mxu0 0
    %321 = vmatpush1.bf16.msra.mxu0 %v303
    %322 = vmatprep.subr.bf16.mxu0 0
    %323 = vmatpush1.bf16.msra.mxu0 %v304
    %324 = vmatprep.subr.bf16.mxu0 0
    %325 = vmatpush1.bf16.msra.mxu0 %v305
    %326 = vmatprep.subr.bf16.mxu0 0
    %327 = vmatpush1.bf16.msra.mxu0 %v306
    %328 = vmatprep.subr.bf16.mxu0 0
    %329 = vmatpush1.bf16.msra.mxu0 %v307
    %330 = vmatprep.subr.bf16.mxu0 0
    %331 = vmatpush1.bf16.msra.mxu0 %v308
    %332 = vmatprep.subr.bf16.mxu0 0
    %333 = vmatpush1.bf16.msra.mxu0 %v309
    %334 = vmatprep.subr.bf16.mxu0 0
    %335 = vmatpush1.bf16.msra.mxu0 0
    %336 = vmatprep.subr.bf16.mxu0 0
    %337 = vmatpush1.bf16.msra.mxu0 0
    %338 = vmatprep.subr.bf16.mxu0 0
    %339 = vmatpush1.bf16.msra.mxu0 0
    %340 = vmatprep.subr.bf16.mxu0 0
    %341 = vmatpush1.bf16.msra.mxu0 0
    %342 = vmatprep.subr.bf16.mxu0 0
    %343 = vmatpush1.bf16.msra.mxu0 0
    %344 = vmatprep.subr.bf16.mxu0 0
    %345 = vmatpush1.bf16.msra.mxu0 0
    %346 = vmatprep.subr.bf16.mxu0 0
    %347 = vmatpush1.bf16.msra.mxu0 0
    %348 = vmatprep.subr.bf16.mxu0 0
    %349 = vmatpush1.bf16.msra.mxu0 0
    %350 = vmatprep.mubr.bf16.mxu0 0
    %351 = vmatmul.mubr.bf16.gmra.mrb[0].mxu0 %v244
    %v352 = vpop.f32.mrb[0].mxu0
    %v353 = vadd.f32 %v268, %v352
    %v354 = vpop.f32.mrb[0].mxu0
    %v355 = vpop.f32.mrb[0].mxu0
    %v356 = vpop.f32.mrb[0].mxu0
    %357 = vdwg.mxu0
    %v358 = vmin.f32 %v353, 20.0
    %v359 = vmul.f32 %v358, 1.442695
    %v360 = vpow.pop %v359
    %v361 = vadd.f32 %v360, 1.0
    %v362 = vmul.f32 %v361, %v361
    %v363 = vsub.f32 %v362, 1.0
    %v364 = vmul.f32 %v353, %v363
    %v365 = vadd.f32 %v362, 1.0
    %v366 = vrcp.pop %v365
    %v367 = vmul.f32 %v364, %v366
    %v368 = vpack.c.bf16 %v367, %v367
    %s369 = scalar_lea.vmem [#allocation4], 192
    %v370 = vld [vmem:[%s369] sm:$0xf]
    %v371 = vld [vmem:[%s369 + $0x4] sm:$0xf]
    %v372 = vld [vmem:[%s369 + $0x8] sm:$0xf]
    %v373 = vld [vmem:[%s369 + $0xc] sm:$0xf]
    %v374 = vld [vmem:[%s369 + $0x10] sm:$0xf]
    %v375 = vld [vmem:[%s369 + $0x14] sm:$0xf]
    %v376 = vld [vmem:[%s369 + $0x18] sm:$0xf]
    %v377 = vld [vmem:[%s369 + $0x1c] sm:$0xf]
    %v378 = vld [vmem:[%s369 + $0x20] sm:$0xf]
    %v379 = vld [vmem:[%s369 + $0x24] sm:$0xf]
    %v380 = vld [vmem:[%s369 + $0x28] sm:$0xf]
    %v381 = vld [vmem:[%s369 + $0x2c] sm:$0xf]
    %v382 = vld [vmem:[%s369 + $0x30] sm:$0xf]
    %v383 = vld [vmem:[%s369 + $0x34] sm:$0xf]
    %v384 = vld [vmem:[%s369 + $0x38] sm:$0xf]
    %v385 = vld [vmem:[%s369 + $0x3c] sm:$0xf]
    %s386 = scalar_lea.vmem %s2, 3
    %v387 = vld [vmem:[%s386] sm:$0x1]
    %v389 = vlaneseq
    %v390 = vshrl.u32 %v389, 7
    %v391 = vsub.s32 0, %v390
    %v392 = vrot.slane %v387, %v391
    %v410 = vunpack.c.l.b16 %v370
    %v411 = vunpack.c.l.b16 %v371
    %v412 = vunpack.c.l.b16 %v372
    %v413 = vunpack.c.l.b16 %v373
    %v414 = vunpack.c.l.b16 %v374
    %v415 = vunpack.c.l.b16 %v375
    %v416 = vunpack.c.l.b16 %v376
    %v417 = vunpack.c.l.b16 %v377
    %v418 = vunpack.c.l.b16 %v378
    %v419 = vunpack.c.l.b16 %v379
    %v420 = vunpack.c.l.b16 %v380
    %v421 = vunpack.c.l.b16 %v381
    %v422 = vunpack.c.l.b16 %v382
    %v423 = vunpack.c.l.b16 %v383
    %v424 = vunpack.c.l.b16 %v384
    %v425 = vunpack.c.l.b16 %v385
    %v426 = vpack.c.b16 %v411, %v410
    %v427 = vpack.c.b16 %v413, %v412
    %v428 = vpack.c.b16 %v415, %v414
    %v429 = vpack.c.b16 %v417, %v416
    %v430 = vpack.c.b16 %v419, %v418
    %v431 = vpack.c.b16 %v421, %v420
    %v432 = vpack.c.b16 %v423, %v422
    %v433 = vpack.c.b16 %v425, %v424
    %442 = vmatprep.subr.bf16.mxu0 0
    %443 = vmatpush1.bf16.msra.mxu0 %v426
    %444 = vmatprep.subr.bf16.mxu0 0
    %445 = vmatpush1.bf16.msra.mxu0 %v427
    %446 = vmatprep.subr.bf16.mxu0 0
    %447 = vmatpush1.bf16.msra.mxu0 %v428
    %448 = vmatprep.subr.bf16.mxu0 0
    %449 = vmatpush1.bf16.msra.mxu0 %v429
    %450 = vmatprep.subr.bf16.mxu0 0
    %451 = vmatpush1.bf16.msra.mxu0 %v430
    %452 = vmatprep.subr.bf16.mxu0 0
    %453 = vmatpush1.bf16.msra.mxu0 %v431
    %454 = vmatprep.subr.bf16.mxu0 0
    %455 = vmatpush1.bf16.msra.mxu0 %v432
    %456 = vmatprep.subr.bf16.mxu0 0
    %457 = vmatpush1.bf16.msra.mxu0 %v433
    %458 = vmatprep.subr.bf16.mxu0 0
    %459 = vmatpush1.bf16.msra.mxu0 0
    %460 = vmatprep.subr.bf16.mxu0 0
    %461 = vmatpush1.bf16.msra.mxu0 0
    %462 = vmatprep.subr.bf16.mxu0 0
    %463 = vmatpush1.bf16.msra.mxu0 0
    %464 = vmatprep.subr.bf16.mxu0 0
    %465 = vmatpush1.bf16.msra.mxu0 0
    %466 = vmatprep.subr.bf16.mxu0 0
    %467 = vmatpush1.bf16.msra.mxu0 0
    %468 = vmatprep.subr.bf16.mxu0 0
    %469 = vmatpush1.bf16.msra.mxu0 0
    %470 = vmatprep.subr.bf16.mxu0 0
    %471 = vmatpush1.bf16.msra.mxu0 0
    %472 = vmatprep.subr.bf16.mxu0 0
    %473 = vmatpush1.bf16.msra.mxu0 0
    %474 = vmatprep.mubr.bf16.mxu0 0
    %475 = vmatmul.mubr.bf16.gmra.mrb[0].mxu0 %v368
    %v476 = vpop.f32.mrb[0].mxu0
    %v477 = vadd.f32 %v392, %v476
    %v478 = vpop.f32.mrb[0].mxu0
    %v479 = vpop.f32.mrb[0].mxu0
    %v480 = vpop.f32.mrb[0].mxu0
    %481 = vdwg.mxu0
    %v482 = vmin.f32 %v477, 20.0
    %v483 = vmul.f32 %v482, 1.442695
    %v484 = vpow.pop %v483
    %v485 = vadd.f32 %v484, 1.0
    %v486 = vmul.f32 %v485, %v485
    %v487 = vsub.f32 %v486, 1.0
    %v488 = vmul.f32 %v477, %v487
    %v489 = vadd.f32 %v486, 1.0
    %v490 = vrcp.pop %v489
    %v491 = vmul.f32 %v488, %v490
    %v492 = vpack.c.bf16 %v491, %v491
    %s493 = scalar_lea.vmem [#allocation4], 256
    %v494 = vld [vmem:[%s493] sm:$0xf]
    %v495 = vld [vmem:[%s493 + $0x4] sm:$0xf]
    %v496 = vld [vmem:[%s493 + $0x8] sm:$0xf]
    %v497 = vld [vmem:[%s493 + $0xc] sm:$0xf]
    %v498 = vld [vmem:[%s493 + $0x10] sm:$0xf]
    %v499 = vld [vmem:[%s493 + $0x14] sm:$0xf]
    %v500 = vld [vmem:[%s493 + $0x18] sm:$0xf]
    %v501 = vld [vmem:[%s493 + $0x1c] sm:$0xf]
    %v502 = vld [vmem:[%s493 + $0x20] sm:$0xf]
    %v503 = vld [vmem:[%s493 + $0x24] sm:$0xf]
    %v504 = vld [vmem:[%s493 + $0x28] sm:$0xf]
    %v505 = vld [vmem:[%s493 + $0x2c] sm:$0xf]
    %v506 = vld [vmem:[%s493 + $0x30] sm:$0xf]
    %v507 = vld [vmem:[%s493 + $0x34] sm:$0xf]
    %v508 = vld [vmem:[%s493 + $0x38] sm:$0xf]
    %v509 = vld [vmem:[%s493 + $0x3c] sm:$0xf]
    %s510 = scalar_lea.vmem %s2, 4
    %v511 = vld [vmem:[%s510] sm:$0x1]
    %v513 = vlaneseq
    %v514 = vshrl.u32 %v513, 7
    %v515 = vsub.s32 0, %v514
    %v516 = vrot.slane %v511, %v515
    %v534 = vunpack.c.l.b16 %v494
    %v535 = vunpack.c.l.b16 %v495
    %v536 = vunpack.c.l.b16 %v496
    %v537 = vunpack.c.l.b16 %v497
    %v538 = vunpack.c.l.b16 %v498
    %v539 = vunpack.c.l.b16 %v499
    %v540 = vunpack.c.l.b16 %v500
    %v541 = vunpack.c.l.b16 %v501
    %v542 = vunpack.c.l.b16 %v502
    %v543 = vunpack.c.l.b16 %v503
    %v544 = vunpack.c.l.b16 %v504
    %v545 = vunpack.c.l.b16 %v505
    %v546 = vunpack.c.l.b16 %v506
    %v547 = vunpack.c.l.b16 %v507
    %v548 = vunpack.c.l.b16 %v508
    %v549 = vunpack.c.l.b16 %v509
    %v550 = vpack.c.b16 %v535, %v534
    %v551 = vpack.c.b16 %v537, %v536
    %v552 = vpack.c.b16 %v539, %v538
    %v553 = vpack.c.b16 %v541, %v540
    %v554 = vpack.c.b16 %v543, %v542
    %v555 = vpack.c.b16 %v545, %v544
    %v556 = vpack.c.b16 %v547, %v546
    %v557 = vpack.c.b16 %v549, %v548
    %566 = vmatprep.subr.bf16.mxu0 0
    %567 = vmatpush1.bf16.msra.mxu0 %v550
    %568 = vmatprep.subr.bf16.mxu0 0
    %569 = vmatpush1.bf16.msra.mxu0 %v551
    %570 = vmatprep.subr.bf16.mxu0 0
    %571 = vmatpush1.bf16.msra.mxu0 %v552
    %572 = vmatprep.subr.bf16.mxu0 0
    %573 = vmatpush1.bf16.msra.mxu0 %v553
    %574 = vmatprep.subr.bf16.mxu0 0
    %575 = vmatpush1.bf16.msra.mxu0 %v554
    %576 = vmatprep.subr.bf16.mxu0 0
    %577 = vmatpush1.bf16.msra.mxu0 %v555
    %578 = vmatprep.subr.bf16.mxu0 0
    %579 = vmatpush1.bf16.msra.mxu0 %v556
    %580 = vmatprep.subr.bf16.mxu0 0
    %581 = vmatpush1.bf16.msra.mxu0 %v557
    %582 = vmatprep.subr.bf16.mxu0 0
    %583 = vmatpush1.bf16.msra.mxu0 0
    %584 = vmatprep.subr.bf16.mxu0 0
    %585 = vmatpush1.bf16.msra.mxu0 0
    %586 = vmatprep.subr.bf16.mxu0 0
    %587 = vmatpush1.bf16.msra.mxu0 0
    %588 = vmatprep.subr.bf16.mxu0 0
    %589 = vmatpush1.bf16.msra.mxu0 0
    %590 = vmatprep.subr.bf16.mxu0 0
    %591 = vmatpush1.bf16.msra.mxu0 0
    %592 = vmatprep.subr.bf16.mxu0 0
    %593 = vmatpush1.bf16.msra.mxu0 0
    %594 = vmatprep.subr.bf16.mxu0 0
    %595 = vmatpush1.bf16.msra.mxu0 0
    %596 = vmatprep.subr.bf16.mxu0 0
    %597 = vmatpush1.bf16.msra.mxu0 0
    %598 = vmatprep.mubr.bf16.mxu0 0
    %599 = vmatmul.mubr.bf16.gmra.mrb[0].mxu0 %v492
    %v600 = vpop.f32.mrb[0].mxu0
    %v601 = vadd.f32 %v516, %v600
    %v602 = vpop.f32.mrb[0].mxu0
    %v603 = vpop.f32.mrb[0].mxu0
    %v604 = vpop.f32.mrb[0].mxu0
    %605 = vdwg.mxu0
    %v606 = vmin.f32 %v601, 20.0
    %v607 = vmul.f32 %v606, 1.442695
    %v608 = vpow.pop %v607
    %v609 = vadd.f32 %v608, 1.0
    %v610 = vmul.f32 %v609, %v609
    %v611 = vsub.f32 %v610, 1.0
    %v612 = vmul.f32 %v601, %v611
    %v613 = vadd.f32 %v610, 1.0
    %v614 = vrcp.pop %v613
    %v615 = vmul.f32 %v612, %v614
    %v616 = vpack.c.bf16 %v615, %v615
    %s617 = scalar_lea.vmem [#allocation4], 320
    %v618 = vld [vmem:[%s617] sm:$0xf]
    %v619 = vld [vmem:[%s617 + $0x4] sm:$0xf]
    %v620 = vld [vmem:[%s617 + $0x8] sm:$0xf]
    %v621 = vld [vmem:[%s617 + $0xc] sm:$0xf]
    %v622 = vld [vmem:[%s617 + $0x10] sm:$0xf]
    %v623 = vld [vmem:[%s617 + $0x14] sm:$0xf]
    %v624 = vld [vmem:[%s617 + $0x18] sm:$0xf]
    %v625 = vld [vmem:[%s617 + $0x1c] sm:$0xf]
    %v626 = vld [vmem:[%s617 + $0x20] sm:$0xf]
    %v627 = vld [vmem:[%s617 + $0x24] sm:$0xf]
    %v628 = vld [vmem:[%s617 + $0x28] sm:$0xf]
    %v629 = vld [vmem:[%s617 + $0x2c] sm:$0xf]
    %v630 = vld [vmem:[%s617 + $0x30] sm:$0xf]
    %v631 = vld [vmem:[%s617 + $0x34] sm:$0xf]
    %v632 = vld [vmem:[%s617 + $0x38] sm:$0xf]
    %v633 = vld [vmem:[%s617 + $0x3c] sm:$0xf]
    %s634 = scalar_lea.vmem %s2, 5
    %v635 = vld [vmem:[%s634] sm:$0x1]
    %v637 = vlaneseq
    %v638 = vshrl.u32 %v637, 7
    %v639 = vsub.s32 0, %v638
    %v640 = vrot.slane %v635, %v639
    %v658 = vunpack.c.l.b16 %v618
    %v659 = vunpack.c.l.b16 %v619
    %v660 = vunpack.c.l.b16 %v620
    %v661 = vunpack.c.l.b16 %v621
    %v662 = vunpack.c.l.b16 %v622
    %v663 = vunpack.c.l.b16 %v623
    %v664 = vunpack.c.l.b16 %v624
    %v665 = vunpack.c.l.b16 %v625
    %v666 = vunpack.c.l.b16 %v626
    %v667 = vunpack.c.l.b16 %v627
    %v668 = vunpack.c.l.b16 %v628
    %v669 = vunpack.c.l.b16 %v629
    %v670 = vunpack.c.l.b16 %v630
    %v671 = vunpack.c.l.b16 %v631
    %v672 = vunpack.c.l.b16 %v632
    %v673 = vunpack.c.l.b16 %v633
    %v674 = vpack.c.b16 %v659, %v658
    %v675 = vpack.c.b16 %v661, %v660
    %v676 = vpack.c.b16 %v663, %v662
    %v677 = vpack.c.b16 %v665, %v664
    %v678 = vpack.c.b16 %v667, %v666
    %v679 = vpack.c.b16 %v669, %v668
    %v680 = vpack.c.b16 %v671, %v670
    %v681 = vpack.c.b16 %v673, %v672
    %690 = vmatprep.subr.bf16.mxu0 0
    %691 = vmatpush1.bf16.msra.mxu0 %v674
    %692 = vmatprep.subr.bf16.mxu0 0
    %693 = vmatpush1.bf16.msra.mxu0 %v675
    %694 = vmatprep.subr.bf16.mxu0 0
    %695 = vmatpush1.bf16.msra.mxu0 %v676
    %696 = vmatprep.subr.bf16.mxu0 0
    %697 = vmatpush1.bf16.msra.mxu0 %v677
    %698 = vmatprep.subr.bf16.mxu0 0
    %699 = vmatpush1.bf16.msra.mxu0 %v678
    %700 = vmatprep.subr.bf16.mxu0 0
    %701 = vmatpush1.bf16.msra.mxu0 %v679
    %702 = vmatprep.subr.bf16.mxu0 0
    %703 = vmatpush1.bf16.msra.mxu0 %v680
    %704 = vmatprep.subr.bf16.mxu0 0
    %705 = vmatpush1.bf16.msra.mxu0 %v681
    %706 = vmatprep.subr.bf16.mxu0 0
    %707 = vmatpush1.bf16.msra.mxu0 0
    %708 = vmatprep.subr.bf16.mxu0 0
    %709 = vmatpush1.bf16.msra.mxu0 0
    %710 = vmatprep.subr.bf16.mxu0 0
    %711 = vmatpush1.bf16.msra.mxu0 0
    %712 = vmatprep.subr.bf16.mxu0 0
    %713 = vmatpush1.bf16.msra.mxu0 0
    %714 = vmatprep.subr.bf16.mxu0 0
    %715 = vmatpush1.bf16.msra.mxu0 0
    %716 = vmatprep.subr.bf16.mxu0 0
    %717 = vmatpush1.bf16.msra.mxu0 0
    %718 = vmatprep.subr.bf16.mxu0 0
    %719 = vmatpush1.bf16.msra.mxu0 0
    %720 = vmatprep.subr.bf16.mxu0 0
    %721 = vmatpush1.bf16.msra.mxu0 0
    %722 = vmatprep.mubr.bf16.mxu0 0
    %723 = vmatmul.mubr.bf16.gmra.mrb[0].mxu0 %v616
    %v724 = vpop.f32.mrb[0].mxu0
    %v725 = vadd.f32 %v640, %v724
    %v726 = vpop.f32.mrb[0].mxu0
    %v727 = vpop.f32.mrb[0].mxu0
    %v728 = vpop.f32.mrb[0].mxu0
    %729 = vdwg.mxu0
    %730 = vst [vmem:[%s3] sm:$0xff] %v725
    // Predicated region
    $region22: #{mlp_forward.1} parent=1 // pred_check
      _
    $region23: #{mlp_forward.1} parent=1 // pred_check_branch
      %732 = sbr.rel (0) target = $region25
    $region24: #{mlp_forward.1} parent=1 // pred_region
      _
    $region25: #{mlp_forward.1} parent=1 // pred_fallthru
      _
    // Predicated region
    $region26: #{mlp_forward.1} parent=1 // pred_check
      _
    $region27: #{mlp_forward.1} parent=1 // pred_check_branch
      %734 = sbr.rel (0) target = $region29
    $region28: #{mlp_forward.1} parent=1 // pred_region
      _
    $region29: #{mlp_forward.1} parent=1 // pred_fallthru
      _
    %735 = vsyncpa [#allocation3], 1
    %736 = vsyncpa [#allocation5], 1

</llo_original>
